<compile_context>
chip_gen: v7x
topology: tpu7x:2x2x1
jax: 0.10.0
libtpu: 0.0.40
codegen_flags: <defaults>
</compile_context>

<pallas_src>
import jax
import jax.numpy as jnp
from jax import lax
from jax.experimental import pallas as pl
from jax.experimental.pallas import tpu as pltpu

EPS = 1e-5
DROP_P = 0.5


def nn_kernel(x_ref,
              w1_ref, b1_ref, g1_ref, be1_ref,
              w2_ref, b2_ref, g2_ref, be2_ref,
              w3_ref, b3_ref,
              m1_ref, m2_ref,
              o_ref):
    x = x_ref[...].astype(jnp.float32)                    # (B, 4)
    inv_b = jnp.float32(1.0 / x.shape[0])

    # ---- fc1 as 4 broadcast FMAs on the VPU (K=4 wastes the MXU) ----
    w1 = w1_ref[...]                                       # (4, 512)
    h = b1_ref[...] + x[:, 0:1] * w1[0:1, :]
    h = h + x[:, 1:2] * w1[1:2, :]
    h = h + x[:, 2:3] * w1[2:3, :]
    h = h + x[:, 3:4] * w1[3:4, :]                         # (B, 512)

    # ---- bn1: one-pass batch stats, folded into a single FMA ----
    s = jnp.sum(h, axis=0, keepdims=True)
    ss = jnp.sum(h * h, axis=0, keepdims=True)
    mean = s * inv_b
    var = ss * inv_b - mean * mean                         # biased variance
    scale = g1_ref[...] * lax.rsqrt(var + EPS)
    shift = be1_ref[...] - mean * scale
    h = jnp.maximum(h * scale + shift, 0.0)                # ReLU
    h = h * m1_ref[...]                                    # dropout (pre-scaled mask)

    # ---- fc2 on the MXU (bf16 inputs, f32 accumulation) ----
    h2 = jnp.dot(h.astype(jnp.bfloat16), w2_ref[...],
                 preferred_element_type=jnp.float32) + b2_ref[...]   # (B, 256)

    # ---- bn2 ----
    s = jnp.sum(h2, axis=0, keepdims=True)
    ss = jnp.sum(h2 * h2, axis=0, keepdims=True)
    mean = s * inv_b
    var = ss * inv_b - mean * mean
    scale = g2_ref[...] * lax.rsqrt(var + EPS)
    shift = be2_ref[...] - mean * scale
    h2 = jnp.maximum(h2 * scale + shift, 0.0)
    h2 = h2 * m2_ref[...]

    # ---- fc3 (N=1): lane reduction instead of an MXU matmul ----
    out = jnp.sum(h2 * w3_ref[...], axis=-1, keepdims=True) + b3_ref[...]
    o_ref[...] = jnp.maximum(out, 0.0)                     # (B, 1)


def nn_forward(x, params, dropout_key):
    """x: (B, ...) flattened to (B, 4). Returns (B, 1) float32."""
    B = x.shape[0]
    x2 = x.reshape(B, -1).astype(jnp.float32)
    assert x2.shape[1] == 4, "NN expects 4 input features after flatten"

    (w1, b1, g1, be1, w2, b2, g2, be2, w3, b3) = params

    # Dropout masks, pre-scaled by 1/(1-p) -> single multiply in the kernel.
    k1, k2 = jax.random.split(dropout_key)
    keep_scale = jnp.float32(1.0 / (1.0 - DROP_P))
    m1 = jax.random.bernoulli(k1, 1.0 - DROP_P, (B, 512)).astype(jnp.float32) * keep_scale
    m2 = jax.random.bernoulli(k2, 1.0 - DROP_P, (B, 256)).astype(jnp.float32) * keep_scale

    # Feed fc2 weights to the MXU in bf16 (f32 accumulation in-kernel).
    w2_bf16 = w2.astype(jnp.bfloat16)

    vmem = pl.BlockSpec(memory_space=pltpu.MemorySpace.VMEM)

    flops = 2 * B * (4 * 512 + 512 * 256 + 256) + 10 * B * (512 + 256)
    bytes_accessed = (
        (4 * 512 + 3 * 512 + 3 * 256 + 256 + 1) * 4   # f32 weights / bn params
        + 512 * 256 * 2                                # bf16 fc2 weight
        + B * (4 + 512 + 256 + 1) * 4                  # input, masks, output
    )
    cost = pl.CostEstimate(flops=flops, transcendentals=768,
                           bytes_accessed=bytes_accessed)

    return pl.pallas_call(
        nn_kernel,
        out_shape=jax.ShapeDtypeStruct((B, 1), jnp.float32),
        in_specs=[vmem] * 13,
        out_specs=vmem,
        cost_estimate=cost,
    )(x2, w1, b1, g1, be1, w2_bf16, b2, g2, be2, w3, b3, m1, m2)


def init_params(key):
    """Deterministic init. Linear weights stored as (in, out); fc3 as (1, 256)."""
    ks = jax.random.split(key, 6)

    def lin(kw, kb, fan_in, fan_out):
        bound = 1.0 / jnp.sqrt(fan_in)
        w = jax.random.uniform(kw, (fan_in, fan_out), jnp.float32, -bound, bound)
        b = jax.random.uniform(kb, (1, fan_out), jnp.float32, -bound, bound)
        return w, b

    w1, b1 = lin(ks[0], ks[1], 4, 512)
    w2, b2 = lin(ks[2], ks[3], 512, 256)
    w3t, b3 = lin(ks[4], ks[5], 256, 1)
    w3 = w3t.reshape(1, 256)          # row vector for the in-kernel lane reduce
    b3 = b3.reshape(1, 1)

    # BatchNorm affine params (torch default: gamma=1, beta=0).
    g1, be1 = jnp.ones((1, 512), jnp.float32), jnp.zeros((1, 512), jnp.float32)
    g2, be2 = jnp.ones((1, 256), jnp.float32), jnp.zeros((1, 256), jnp.float32)

    return (w1, b1, g1, be1, w2, b2, g2, be2, w3, b3)


if __name__ == "__main__":
    key = jax.random.PRNGKey(0)
    k_param, k_x, k_drop = jax.random.split(key, 3)

    params = init_params(k_param)

    B = 8                                   # small batch, 4 features
    x = jax.random.normal(k_x, (B, 4), dtype=jnp.float32)

    out = nn_forward(x, params, dropout_key=k_drop)
    out = jax.block_until_ready(out)

    assert out.shape == (B, 1)
    assert bool(jnp.all(out >= 0.0))        # final ReLU
    assert bool(jnp.all(jnp.isfinite(out)))
    print("KERNEL_OK")
</pallas_src>

<mosaic_0001>
module attributes {stable_mosaic.version = 11 : i64} {
  func.func @nn_kernel(%arg0: memref<8x4xf32, #tpu.memory_space<vmem>>, %arg1: memref<4x512xf32, #tpu.memory_space<vmem>>, %arg2: memref<1x512xf32, #tpu.memory_space<vmem>>, %arg3: memref<1x512xf32, #tpu.memory_space<vmem>>, %arg4: memref<1x512xf32, #tpu.memory_space<vmem>>, %arg5: memref<512x256xbf16, #tpu.memory_space<vmem>>, %arg6: memref<1x256xf32, #tpu.memory_space<vmem>>, %arg7: memref<1x256xf32, #tpu.memory_space<vmem>>, %arg8: memref<1x256xf32, #tpu.memory_space<vmem>>, %arg9: memref<1x256xf32, #tpu.memory_space<vmem>>, %arg10: memref<1x1xf32, #tpu.memory_space<vmem>>, %arg11: memref<8x512xf32, #tpu.memory_space<vmem>>, %arg12: memref<8x256xf32, #tpu.memory_space<vmem>>, %arg13: memref<8x1xf32, #tpu.memory_space<vmem>>) attributes {dimension_semantics = [], scalar_prefetch = 0 : i64, scratch_operands = 0 : i64, tpu.core_type = #tpu.core_type<tc>} {
    %c0 = arith.constant 0 : index
    %c0_0 = arith.constant 0 : index
    %0 = vector.load %arg0[%c0, %c0_0] : memref<8x4xf32, #tpu.memory_space<vmem>>, vector<8x4xf32>
    %c0_1 = arith.constant 0 : index
    %c0_2 = arith.constant 0 : index
    %1 = vector.load %arg1[%c0_1, %c0_2] : memref<4x512xf32, #tpu.memory_space<vmem>>, vector<4x512xf32>
    %c0_3 = arith.constant 0 : index
    %c0_4 = arith.constant 0 : index
    %2 = vector.load %arg2[%c0_3, %c0_4] : memref<1x512xf32, #tpu.memory_space<vmem>>, vector<1x512xf32>
    %3 = vector.extract_strided_slice %0 {offsets = [0, 0], sizes = [8, 1], strides = [1, 1]} : vector<8x4xf32> to vector<8x1xf32>
    %4 = vector.extract_strided_slice %1 {offsets = [0, 0], sizes = [1, 512], strides = [1, 1]} : vector<4x512xf32> to vector<1x512xf32>
    %5 = vector.broadcast %3 : vector<8x1xf32> to vector<8x512xf32>
    %6 = vector.broadcast %4 : vector<1x512xf32> to vector<8x512xf32>
    %7 = arith.mulf %5, %6 : vector<8x512xf32>
    %8 = vector.broadcast %2 : vector<1x512xf32> to vector<8x512xf32>
    %9 = arith.addf %8, %7 : vector<8x512xf32>
    %10 = vector.extract_strided_slice %0 {offsets = [0, 1], sizes = [8, 1], strides = [1, 1]} : vector<8x4xf32> to vector<8x1xf32>
    %11 = vector.extract_strided_slice %1 {offsets = [1, 0], sizes = [1, 512], strides = [1, 1]} : vector<4x512xf32> to vector<1x512xf32>
    %12 = vector.broadcast %10 : vector<8x1xf32> to vector<8x512xf32>
    %13 = vector.broadcast %11 : vector<1x512xf32> to vector<8x512xf32>
    %14 = arith.mulf %12, %13 : vector<8x512xf32>
    %15 = arith.addf %9, %14 : vector<8x512xf32>
    %16 = vector.extract_strided_slice %0 {offsets = [0, 2], sizes = [8, 1], strides = [1, 1]} : vector<8x4xf32> to vector<8x1xf32>
    %17 = vector.extract_strided_slice %1 {offsets = [2, 0], sizes = [1, 512], strides = [1, 1]} : vector<4x512xf32> to vector<1x512xf32>
    %18 = vector.broadcast %16 : vector<8x1xf32> to vector<8x512xf32>
    %19 = vector.broadcast %17 : vector<1x512xf32> to vector<8x512xf32>
    %20 = arith.mulf %18, %19 : vector<8x512xf32>
    %21 = arith.addf %15, %20 : vector<8x512xf32>
    %22 = vector.extract_strided_slice %0 {offsets = [0, 3], sizes = [8, 1], strides = [1, 1]} : vector<8x4xf32> to vector<8x1xf32>
    %23 = vector.extract_strided_slice %1 {offsets = [3, 0], sizes = [1, 512], strides = [1, 1]} : vector<4x512xf32> to vector<1x512xf32>
    %24 = vector.broadcast %22 : vector<8x1xf32> to vector<8x512xf32>
    %25 = vector.broadcast %23 : vector<1x512xf32> to vector<8x512xf32>
    %26 = arith.mulf %24, %25 : vector<8x512xf32>
    %27 = arith.addf %21, %26 : vector<8x512xf32>
    %cst = arith.constant dense<0.000000e+00> : vector<512xf32>
    %28 = vector.multi_reduction <add>, %27, %cst [0] : vector<8x512xf32> to vector<512xf32>
    %29 = vector.shape_cast %28 : vector<512xf32> to vector<1x512xf32>
    %30 = arith.mulf %27, %27 : vector<8x512xf32>
    %cst_5 = arith.constant dense<0.000000e+00> : vector<512xf32>
    %31 = vector.multi_reduction <add>, %30, %cst_5 [0] : vector<8x512xf32> to vector<512xf32>
    %32 = vector.shape_cast %31 : vector<512xf32> to vector<1x512xf32>
    %cst_6 = arith.constant 1.250000e-01 : f32
    %33 = vector.broadcast %cst_6 : f32 to vector<1x512xf32>
    %34 = arith.mulf %29, %33 : vector<1x512xf32>
    %cst_7 = arith.constant 1.250000e-01 : f32
    %35 = vector.broadcast %cst_7 : f32 to vector<1x512xf32>
    %36 = arith.mulf %32, %35 : vector<1x512xf32>
    %37 = arith.mulf %34, %34 : vector<1x512xf32>
    %38 = arith.subf %36, %37 : vector<1x512xf32>
    %c0_8 = arith.constant 0 : index
    %c0_9 = arith.constant 0 : index
    %39 = vector.load %arg3[%c0_8, %c0_9] : memref<1x512xf32, #tpu.memory_space<vmem>>, vector<1x512xf32>
    %cst_10 = arith.constant 9.99999974E-6 : f32
    %40 = vector.broadcast %cst_10 : f32 to vector<1x512xf32>
    %41 = arith.addf %38, %40 : vector<1x512xf32>
    %42 = math.rsqrt %41 : vector<1x512xf32>
    %43 = arith.mulf %39, %42 : vector<1x512xf32>
    %c0_11 = arith.constant 0 : index
    %c0_12 = arith.constant 0 : index
    %44 = vector.load %arg4[%c0_11, %c0_12] : memref<1x512xf32, #tpu.memory_space<vmem>>, vector<1x512xf32>
    %45 = arith.mulf %34, %43 : vector<1x512xf32>
    %46 = arith.subf %44, %45 : vector<1x512xf32>
    %47 = vector.broadcast %43 : vector<1x512xf32> to vector<8x512xf32>
    %48 = arith.mulf %27, %47 : vector<8x512xf32>
    %49 = vector.broadcast %46 : vector<1x512xf32> to vector<8x512xf32>
    %50 = arith.addf %48, %49 : vector<8x512xf32>
    %cst_13 = arith.constant 0.000000e+00 : f32
    %51 = vector.broadcast %cst_13 : f32 to vector<8x512xf32>
    %52 = arith.maximumf %50, %51 : vector<8x512xf32>
    %c0_14 = arith.constant 0 : index
    %c0_15 = arith.constant 0 : index
    %53 = vector.load %arg11[%c0_14, %c0_15] : memref<8x512xf32, #tpu.memory_space<vmem>>, vector<8x512xf32>
    %54 = arith.mulf %52, %53 : vector<8x512xf32>
    %55 = arith.truncf %54 : vector<8x512xf32> to vector<8x512xbf16>
    %c0_16 = arith.constant 0 : index
    %c0_17 = arith.constant 0 : index
    %56 = vector.load %arg5[%c0_16, %c0_17] : memref<512x256xbf16, #tpu.memory_space<vmem>>, vector<512x256xbf16>
    %cst_18 = arith.constant dense<0.000000e+00> : vector<8x256xf32>
    %57 = tpu.matmul %55, %56, %cst_18 {dimension_numbers = #tpu.dot_dimension_numbers<[1], [0], [0], [1], [0, 0, 1, 1], [], []>} : vector<8x512xbf16>, vector<512x256xbf16>, vector<8x256xf32> -> vector<8x256xf32>
    %c0_19 = arith.constant 0 : index
    %c0_20 = arith.constant 0 : index
    %58 = vector.load %arg6[%c0_19, %c0_20] : memref<1x256xf32, #tpu.memory_space<vmem>>, vector<1x256xf32>
    %59 = vector.broadcast %58 : vector<1x256xf32> to vector<8x256xf32>
    %60 = arith.addf %57, %59 : vector<8x256xf32>
    %cst_21 = arith.constant dense<0.000000e+00> : vector<256xf32>
    %61 = vector.multi_reduction <add>, %60, %cst_21 [0] : vector<8x256xf32> to vector<256xf32>
    %62 = vector.shape_cast %61 : vector<256xf32> to vector<1x256xf32>
    %63 = arith.mulf %60, %60 : vector<8x256xf32>
    %cst_22 = arith.constant dense<0.000000e+00> : vector<256xf32>
    %64 = vector.multi_reduction <add>, %63, %cst_22 [0] : vector<8x256xf32> to vector<256xf32>
    %65 = vector.shape_cast %64 : vector<256xf32> to vector<1x256xf32>
    %cst_23 = arith.constant 1.250000e-01 : f32
    %66 = vector.broadcast %cst_23 : f32 to vector<1x256xf32>
    %67 = arith.mulf %62, %66 : vector<1x256xf32>
    %cst_24 = arith.constant 1.250000e-01 : f32
    %68 = vector.broadcast %cst_24 : f32 to vector<1x256xf32>
    %69 = arith.mulf %65, %68 : vector<1x256xf32>
    %70 = arith.mulf %67, %67 : vector<1x256xf32>
    %71 = arith.subf %69, %70 : vector<1x256xf32>
    %c0_25 = arith.constant 0 : index
    %c0_26 = arith.constant 0 : index
    %72 = vector.load %arg7[%c0_25, %c0_26] : memref<1x256xf32, #tpu.memory_space<vmem>>, vector<1x256xf32>
    %cst_27 = arith.constant 9.99999974E-6 : f32
    %73 = vector.broadcast %cst_27 : f32 to vector<1x256xf32>
    %74 = arith.addf %71, %73 : vector<1x256xf32>
    %75 = math.rsqrt %74 : vector<1x256xf32>
    %76 = arith.mulf %72, %75 : vector<1x256xf32>
    %c0_28 = arith.constant 0 : index
    %c0_29 = arith.constant 0 : index
    %77 = vector.load %arg8[%c0_28, %c0_29] : memref<1x256xf32, #tpu.memory_space<vmem>>, vector<1x256xf32>
    %78 = arith.mulf %67, %76 : vector<1x256xf32>
    %79 = arith.subf %77, %78 : vector<1x256xf32>
    %80 = vector.broadcast %76 : vector<1x256xf32> to vector<8x256xf32>
    %81 = arith.mulf %60, %80 : vector<8x256xf32>
    %82 = vector.broadcast %79 : vector<1x256xf32> to vector<8x256xf32>
    %83 = arith.addf %81, %82 : vector<8x256xf32>
    %cst_30 = arith.constant 0.000000e+00 : f32
    %84 = vector.broadcast %cst_30 : f32 to vector<8x256xf32>
    %85 = arith.maximumf %83, %84 : vector<8x256xf32>
    %c0_31 = arith.constant 0 : index
    %c0_32 = arith.constant 0 : index
    %86 = vector.load %arg12[%c0_31, %c0_32] : memref<8x256xf32, #tpu.memory_space<vmem>>, vector<8x256xf32>
    %87 = arith.mulf %85, %86 : vector<8x256xf32>
    %c0_33 = arith.constant 0 : index
    %c0_34 = arith.constant 0 : index
    %88 = vector.load %arg9[%c0_33, %c0_34] : memref<1x256xf32, #tpu.memory_space<vmem>>, vector<1x256xf32>
    %89 = vector.broadcast %88 : vector<1x256xf32> to vector<8x256xf32>
    %90 = arith.mulf %87, %89 : vector<8x256xf32>
    %cst_35 = arith.constant dense<0.000000e+00> : vector<8xf32>
    %91 = vector.multi_reduction <add>, %90, %cst_35 [1] : vector<8x256xf32> to vector<8xf32>
    %92 = vector.shape_cast %91 : vector<8xf32> to vector<8x1xf32>
    %c0_36 = arith.constant 0 : index
    %c0_37 = arith.constant 0 : index
    %93 = vector.load %arg10[%c0_36, %c0_37] : memref<1x1xf32, #tpu.memory_space<vmem>>, vector<1x1xf32>
    %94 = vector.broadcast %93 : vector<1x1xf32> to vector<8x1xf32>
    %95 = arith.addf %92, %94 : vector<8x1xf32>
    %cst_38 = arith.constant 0.000000e+00 : f32
    %96 = vector.broadcast %cst_38 : f32 to vector<8x1xf32>
    %97 = arith.maximumf %95, %96 : vector<8x1xf32>
    %c0_39 = arith.constant 0 : index
    %c0_40 = arith.constant 0 : index
    %98 = vector.load %arg13[%c0_39, %c0_40] : memref<8x1xf32, #tpu.memory_space<vmem>>, vector<8x1xf32>
    tpu.vector_store %arg13[%c0_39, %c0_40], %97 {strides = array<i32>} : memref<8x1xf32, #tpu.memory_space<vmem>>, vector<8x1xf32>,
    return
  }
}

</mosaic_0001>

<llo_original>
// kernel: tpu_custom_call.1
$region0: #{tpu_custom_call.1}
  #allocation0 [shape = 'u32[]', space=smem, size = 0x4, offset = 0x4, fixed_abs, tag = 'smem constant byte address 0x4 - core index']
  #allocation1 [shape = 'u32[144,128]{1,0:T(1,128)}', space=vmem, size = 0x12000, scoped, tag = 'internal scratch']
  #allocation2 [shape = 'f32[1,1]{1,0:T(1,128)S(1)}', space=vmem, size = 0x200, scoped, tag = 'scoped memory for tpu_custom_call.1']
  %s0 = inlined_call_operand.vmem [shape: f32[8,4], index: 0, kind: input, shape index: {}]
  %s1 = inlined_call_operand.vmem [shape: f32[4,512], index: 1, kind: input, shape index: {}]
  %s2 = inlined_call_operand.vmem [shape: f32[1,512], index: 2, kind: input, shape index: {}]
  %s3 = inlined_call_operand.hbm [shape: f32[1,512], index: 3, kind: input, shape index: {}]
  %s4 = inlined_call_operand.hbm [shape: f32[1,512], index: 4, kind: input, shape index: {}]
  %s5 = inlined_call_operand.hbm [shape: bf16[512,256], index: 5, kind: input, shape index: {}]
  %s6 = inlined_call_operand.hbm [shape: f32[1,256], index: 6, kind: input, shape index: {}]
  %s7 = inlined_call_operand.hbm [shape: f32[1,256], index: 7, kind: input, shape index: {}]
  %s8 = inlined_call_operand.hbm [shape: f32[1,256], index: 8, kind: input, shape index: {}]
  %s9 = inlined_call_operand.hbm [shape: f32[1,256], index: 9, kind: input, shape index: {}]
  %s10 = inlined_call_operand.<no memory space> [shape: f32[1,1], index: 10, kind: input, shape index: {}]
  %s11 = inlined_call_operand.vmem [shape: f32[8,512], index: 11, kind: input, shape index: {}]
  %s12 = inlined_call_operand.hbm [shape: f32[8,256], index: 12, kind: input, shape index: {}]
  %s13 = inlined_call_operand.vmem [shape: f32[8,1], index: 13, kind: output, shape index: {}]
  %s14 = sld [smem:[#allocation0]]
  $region94: #{tpu_custom_call.1} parent=0
    _
  %s16 = ssub.s32 1, %s14
  %s17 = scalar_select 0, %s16, %s14
  %v18 = vstv %s10
  %19 = vst [vmem:[#allocation2] sm:$0x1] %v18
  $region1: #{tpu_custom_call.1} parent=0
    #allocation3 [shape = 'u8[2048]{0}', space=vmem, size = 0x800, scoped, tag = 'input window, operand 3, single buffered']
    #allocation4 [shape = 's32[1]{0}', space=sflag, size = 0x4, scoped, tag = 'scoped memory for tpu_custom_call.1']
    #allocation5 [shape = 'u8[2048]{0}', space=vmem, size = 0x800, scoped, tag = 'input window, operand 4, single buffered']
    #allocation6 [shape = 's32[1]{0}', space=sflag, size = 0x4, scoped, tag = 'scoped memory for tpu_custom_call.1']
    #allocation7 [shape = 'u8[262144]{0}', space=vmem, size = 0x40000, scoped, tag = 'input window, operand 5, single buffered']
    #allocation8 [shape = 'u8[1024]{0}', space=vmem, size = 0x400, scoped, tag = 'input window, operand 6, single buffered']
    #allocation9 [shape = 's32[1]{0}', space=sflag, size = 0x4, scoped, tag = 'scoped memory for tpu_custom_call.1']
    #allocation10 [shape = 'u8[1024]{0}', space=vmem, size = 0x400, scoped, tag = 'input window, operand 7, single buffered']
    #allocation11 [shape = 'u8[1024]{0}', space=vmem, size = 0x400, scoped, tag = 'input window, operand 8, single buffered']
    #allocation12 [shape = 's32[1]{0}', space=sflag, size = 0x4, scoped, tag = 'scoped memory for tpu_custom_call.1']
    #allocation13 [shape = 'u8[1024]{0}', space=vmem, size = 0x400, scoped, tag = 'input window, operand 9, single buffered']
    #allocation14 [shape = 'u8[8192]{0}', space=vmem, size = 0x2000, scoped, tag = 'input window, operand 12, single buffered']
    #allocation15 [shape = 's32[1]{0}', space=sflag, size = 0x4, scoped, tag = 'scoped memory for tpu_custom_call.1']
    %20 = vsyncpa [#allocation4], 0
    %21 = vsyncpa [#allocation6], 0
    %22 = vsyncpa [#allocation9], 0
    %23 = vsyncpa [#allocation12], 0
    %24 = vsyncpa [#allocation15], 0
    // Predicated region
    $region2: #{tpu_custom_call.1} parent=1 // pred_check
      _
    $region3: #{tpu_custom_call.1} parent=1 // pred_check_branch
      %26 = sbr.rel (0) target = $region5
    $region4: #{tpu_custom_call.1} parent=1 // pred_region
      _
    $region5: #{tpu_custom_call.1} parent=1 // pred_fallthru
      _
    // Predicated region
    $region6: #{tpu_custom_call.1} parent=1 // pred_check
      _
    $region7: #{tpu_custom_call.1} parent=1 // pred_check_branch
      %28 = sbr.rel (0) target = $region9
    $region8: #{tpu_custom_call.1} parent=1 // pred_region
      _
    $region9: #{tpu_custom_call.1} parent=1 // pred_fallthru
      _
    // Predicated region
    $region10: #{tpu_custom_call.1} parent=1 // pred_check
      _
    $region11: #{tpu_custom_call.1} parent=1 // pred_check_branch
      %30 = sbr.rel (0) target = $region13
    $region12: #{tpu_custom_call.1} parent=1 // pred_region
      _
    $region13: #{tpu_custom_call.1} parent=1 // pred_fallthru
      _
    // Predicated region
    $region14: #{tpu_custom_call.1} parent=1 // pred_check
      _
    $region15: #{tpu_custom_call.1} parent=1 // pred_check_branch
      %32 = sbr.rel (0) target = $region17
    $region16: #{tpu_custom_call.1} parent=1 // pred_region
      %s34 = ssub.s32 64, 64
      %35 = vsyncadd [#allocation4], %s34
      %s37 = sshll.u32 [#allocation3], 4
      %s38 = int_to_ptr.vmem [resolvable:$true] %s37
      %40 = dma.hbm_to_vmem [thread:$0]  %s3, 64, %s38, [#allocation4]
    $region17: #{tpu_custom_call.1} parent=1 // pred_fallthru
      _
    // Predicated region
    $region18: #{tpu_custom_call.1} parent=1 // pred_check
      _
    $region19: #{tpu_custom_call.1} parent=1 // pred_check_branch
      %42 = sbr.rel (0) target = $region21
    $region20: #{tpu_custom_call.1} parent=1 // pred_region
      %s44 = ssub.s32 64, 64
      %45 = vsyncadd [#allocation6], %s44
      %s47 = sshll.u32 [#allocation5], 4
      %s48 = int_to_ptr.vmem [resolvable:$true] %s47
      %50 = dma.hbm_to_vmem [thread:$0]  %s4, 64, %s48, [#allocation6]
    $region21: #{tpu_custom_call.1} parent=1 // pred_fallthru
      _
    // Predicated region
    $region22: #{tpu_custom_call.1} parent=1 // pred_check
      _
    $region23: #{tpu_custom_call.1} parent=1 // pred_check_branch
      %52 = sbr.rel (0) target = $region25
    $region24: #{tpu_custom_call.1} parent=1 // pred_region
      %s54 = ssub.s32 8192, 8192
      %55 = vsyncadd [#allocation6], %s54
      %s56 = sshll.u32 [#allocation7], 4
      %s57 = int_to_ptr.vmem [resolvable:$true] %s56
      %62 = dma.hbm_to_vmem [thread:$0]  %s5, 8192, %s57, [#allocation6], 128, 128, 8
    $region25: #{tpu_custom_call.1} parent=1 // pred_fallthru
      _
    // Predicated region
    $region26: #{tpu_custom_call.1} parent=1 // pred_check
      _
    $region27: #{tpu_custom_call.1} parent=1 // pred_check_branch
      %64 = sbr.rel (0) target = $region29
    $region28: #{tpu_custom_call.1} parent=1 // pred_region
      %s66 = ssub.s32 32, 32
      %67 = vsyncadd [#allocation9], %s66
      %s69 = sshll.u32 [#allocation8], 4
      %s70 = int_to_ptr.vmem [resolvable:$true] %s69
      %72 = dma.hbm_to_vmem [thread:$0]  %s6, 32, %s70, [#allocation9]
    $region29: #{tpu_custom_call.1} parent=1 // pred_fallthru
      _
    // Predicated region
    $region30: #{tpu_custom_call.1} parent=1 // pred_check
      _
    $region31: #{tpu_custom_call.1} parent=1 // pred_check_branch
      %74 = sbr.rel (0) target = $region33
    $region32: #{tpu_custom_call.1} parent=1 // pred_region
      %s76 = ssub.s32 32, 32
      %77 = vsyncadd [#allocation9], %s76
      %s79 = sshll.u32 [#allocation10], 4
      %s80 = int_to_ptr.vmem [resolvable:$true] %s79
      %82 = dma.hbm_to_vmem [thread:$0]  %s7, 32, %s80, [#allocation9]
    $region33: #{tpu_custom_call.1} parent=1 // pred_fallthru
      _
    // Predicated region
    $region34: #{tpu_custom_call.1} parent=1 // pred_check
      _
    $region35: #{tpu_custom_call.1} parent=1 // pred_check_branch
      %84 = sbr.rel (0) target = $region37
    $region36: #{tpu_custom_call.1} parent=1 // pred_region
      %s86 = ssub.s32 32, 32
      %87 = vsyncadd [#allocation12], %s86
      %s89 = sshll.u32 [#allocation11], 4
      %s90 = int_to_ptr.vmem [resolvable:$true] %s89
      %92 = dma.hbm_to_vmem [thread:$0]  %s8, 32, %s90, [#allocation12]
    $region37: #{tpu_custom_call.1} parent=1 // pred_fallthru
      _
    // Predicated region
    $region38: #{tpu_custom_call.1} parent=1 // pred_check
      _
    $region39: #{tpu_custom_call.1} parent=1 // pred_check_branch
      %94 = sbr.rel (0) target = $region41
    $region40: #{tpu_custom_call.1} parent=1 // pred_region
      %s96 = ssub.s32 32, 32
      %97 = vsyncadd [#allocation12], %s96
      %s99 = sshll.u32 [#allocation13], 4
      %s100 = int_to_ptr.vmem [resolvable:$true] %s99
      %102 = dma.hbm_to_vmem [thread:$0]  %s9, 32, %s100, [#allocation12]
    $region41: #{tpu_custom_call.1} parent=1 // pred_fallthru
      _
    // Predicated region
    $region42: #{tpu_custom_call.1} parent=1 // pred_check
      _
    $region43: #{tpu_custom_call.1} parent=1 // pred_check_branch
      %104 = sbr.rel (0) target = $region45
    $region44: #{tpu_custom_call.1} parent=1 // pred_region
      _
    $region45: #{tpu_custom_call.1} parent=1 // pred_fallthru
      _
    // Predicated region
    $region46: #{tpu_custom_call.1} parent=1 // pred_check
      _
    $region47: #{tpu_custom_call.1} parent=1 // pred_check_branch
      %106 = sbr.rel (0) target = $region49
    $region48: #{tpu_custom_call.1} parent=1 // pred_region
      _
    $region49: #{tpu_custom_call.1} parent=1 // pred_fallthru
      _
    // Predicated region
    $region50: #{tpu_custom_call.1} parent=1 // pred_check
      _
    $region51: #{tpu_custom_call.1} parent=1 // pred_check_branch
      %108 = sbr.rel (0) target = $region53
    $region52: #{tpu_custom_call.1} parent=1 // pred_region
      %s110 = ssub.s32 256, 256
      %111 = vsyncadd [#allocation15], %s110
      %s113 = sshll.u32 [#allocation14], 4
      %s114 = int_to_ptr.vmem [resolvable:$true] %s113
      %116 = dma.hbm_to_vmem [thread:$0]  %s12, 256, %s114, [#allocation15]
    $region53: #{tpu_custom_call.1} parent=1 // pred_fallthru
      _
    // Predicated region
    $region54: #{tpu_custom_call.1} parent=1 // pred_check
      _
    $region55: #{tpu_custom_call.1} parent=1 // pred_check_branch
      %118 = sbr.rel (0) target = $region57
    $region56: #{tpu_custom_call.1} parent=1 // pred_region
      %119 = dma.done [#allocation4], 64
    $region57: #{tpu_custom_call.1} parent=1 // pred_fallthru
      _
    // Predicated region
    $region58: #{tpu_custom_call.1} parent=1 // pred_check
      _
    $region59: #{tpu_custom_call.1} parent=1 // pred_check_branch
      %121 = sbr.rel (0) target = $region61
    $region60: #{tpu_custom_call.1} parent=1 // pred_region
      %122 = dma.done [#allocation6], 64
    $region61: #{tpu_custom_call.1} parent=1 // pred_fallthru
      _
    // Predicated region
    $region62: #{tpu_custom_call.1} parent=1 // pred_check
      _
    $region63: #{tpu_custom_call.1} parent=1 // pred_check_branch
      %124 = sbr.rel (0) target = $region65
    $region64: #{tpu_custom_call.1} parent=1 // pred_region
      %125 = dma.done [#allocation6], 8192
    $region65: #{tpu_custom_call.1} parent=1 // pred_fallthru
      _
    // Predicated region
    $region66: #{tpu_custom_call.1} parent=1 // pred_check
      _
    $region67: #{tpu_custom_call.1} parent=1 // pred_check_branch
      %127 = sbr.rel (0) target = $region69
    $region68: #{tpu_custom_call.1} parent=1 // pred_region
      %128 = dma.done [#allocation9], 32
    $region69: #{tpu_custom_call.1} parent=1 // pred_fallthru
      _
    // Predicated region
    $region70: #{tpu_custom_call.1} parent=1 // pred_check
      _
    $region71: #{tpu_custom_call.1} parent=1 // pred_check_branch
      %130 = sbr.rel (0) target = $region73
    $region72: #{tpu_custom_call.1} parent=1 // pred_region
      %131 = dma.done [#allocation9], 32
    $region73: #{tpu_custom_call.1} parent=1 // pred_fallthru
      _
    // Predicated region
    $region74: #{tpu_custom_call.1} parent=1 // pred_check
      _
    $region75: #{tpu_custom_call.1} parent=1 // pred_check_branch
      %133 = sbr.rel (0) target = $region77
    $region76: #{tpu_custom_call.1} parent=1 // pred_region
      %134 = dma.done [#allocation12], 32
    $region77: #{tpu_custom_call.1} parent=1 // pred_fallthru
      _
    // Predicated region
    $region78: #{tpu_custom_call.1} parent=1 // pred_check
      _
    $region79: #{tpu_custom_call.1} parent=1 // pred_check_branch
      %136 = sbr.rel (0) target = $region81
    $region80: #{tpu_custom_call.1} parent=1 // pred_region
      %137 = dma.done [#allocation12], 32
    $region81: #{tpu_custom_call.1} parent=1 // pred_fallthru
      _
    // Predicated region
    $region82: #{tpu_custom_call.1} parent=1 // pred_check
      _
    $region83: #{tpu_custom_call.1} parent=1 // pred_check_branch
      %139 = sbr.rel (0) target = $region85
    $region84: #{tpu_custom_call.1} parent=1 // pred_region
      %140 = dma.done [#allocation15], 256
    $region85: #{tpu_custom_call.1} parent=1 // pred_fallthru
      _
    %v141 = vld [vmem:[%s0] sm:$0xff]
    %v142 = vld [vmem:[%s1] sm:$0xff]
    %v143 = vld [vmem:[%s1 + $0x8] sm:$0xff]
    %v144 = vld [vmem:[%s2] sm:$0xf]
    %146 = vset.pattern.permute.xlu0 0
    %147 = vperm.xlu0 %146, %v141
    %v148 = vpop.permute.xlu0 %147
    %v152 = vlaneseq
    %v153 = vshrl.u32 %v152, 7
    %v154 = vsub.s32 0, %v153
    %v155 = vrot.slane %v142, %v154
    %v156 = vlaneseq
    %v157 = vshrl.u32 %v156, 7
    %v158 = vsub.s32 4, %v157
    %v159 = vrot.slane %v142, %v158
    %v160 = vlaneseq
    %v161 = vshrl.u32 %v160, 7
    %v162 = vsub.s32 0, %v161
    %v163 = vrot.slane %v143, %v162
    %v164 = vlaneseq
    %v165 = vshrl.u32 %v164, 7
    %v166 = vsub.s32 4, %v165
    %v167 = vrot.slane %v143, %v166
    %v172 = vlaneseq
    %v173 = vshrl.u32 %v172, 7
    %v174 = vsub.s32 0, %v173
    %v175 = vrot.slane %v155, %v174
    %v176 = vlaneseq
    %v177 = vshrl.u32 %v176, 7
    %v178 = vsub.s32 0, %v177
    %v179 = vrot.slane %v159, %v178
    %v180 = vlaneseq
    %v181 = vshrl.u32 %v180, 7
    %v182 = vsub.s32 0, %v181
    %v183 = vrot.slane %v163, %v182
    %v184 = vlaneseq
    %v185 = vshrl.u32 %v184, 7
    %v186 = vsub.s32 0, %v185
    %v187 = vrot.slane %v167, %v186
    %v188 = vmul.f32 %v148, %v175
    %v189 = vmul.f32 %v148, %v179
    %v190 = vmul.f32 %v148, %v183
    %v191 = vmul.f32 %v148, %v187
    %v193 = vlaneseq
    %v194 = vshrl.u32 %v193, 7
    %v195 = vsub.s32 0, %v194
    %v196 = vrot.slane %v144, %v195
    %v197 = vlaneseq
    %v198 = vshrl.u32 %v197, 7
    %v199 = vsub.s32 1, %v198
    %v200 = vrot.slane %v144, %v199
    %v201 = vlaneseq
    %v202 = vshrl.u32 %v201, 7
    %v203 = vsub.s32 2, %v202
    %v204 = vrot.slane %v144, %v203
    %v205 = vlaneseq
    %v206 = vshrl.u32 %v205, 7
    %v207 = vsub.s32 3, %v206
    %v208 = vrot.slane %v144, %v207
    %v213 = vadd.f32 %v196, %v188
    %v214 = vadd.f32 %v200, %v189
    %v215 = vadd.f32 %v204, %v190
    %v216 = vadd.f32 %v208, %v191
    %217 = vset.pattern.permute.xlu0 1
    %218 = vperm.xlu0 %217, %v141
    %v219 = vpop.permute.xlu0 %218
    %v221 = vlaneseq
    %v222 = vshrl.u32 %v221, 7
    %v223 = vsub.s32 1, %v222
    %v224 = vrot.slane %v142, %v223
    %v225 = vlaneseq
    %v226 = vshrl.u32 %v225, 7
    %v227 = vsub.s32 5, %v226
    %v228 = vrot.slane %v142, %v227
    %v229 = vlaneseq
    %v230 = vshrl.u32 %v229, 7
    %v231 = vsub.s32 1, %v230
    %v232 = vrot.slane %v143, %v231
    %v233 = vlaneseq
    %v234 = vshrl.u32 %v233, 7
    %v235 = vsub.s32 5, %v234
    %v236 = vrot.slane %v143, %v235
    %v241 = vlaneseq
    %v242 = vshrl.u32 %v241, 7
    %v243 = vsub.s32 1, %v242
    %v244 = vrot.slane %v224, %v243
    %v245 = vlaneseq
    %v246 = vshrl.u32 %v245, 7
    %v247 = vsub.s32 1, %v246
    %v248 = vrot.slane %v228, %v247
    %v249 = vlaneseq
    %v250 = vshrl.u32 %v249, 7
    %v251 = vsub.s32 1, %v250
    %v252 = vrot.slane %v232, %v251
    %v253 = vlaneseq
    %v254 = vshrl.u32 %v253, 7
    %v255 = vsub.s32 1, %v254
    %v256 = vrot.slane %v236, %v255
    %v257 = vmul.f32 %v219, %v244
    %v258 = vmul.f32 %v219, %v248
    %v259 = vmul.f32 %v219, %v252
    %v260 = vmul.f32 %v219, %v256
    %v261 = vadd.f32 %v213, %v257
    %v262 = vadd.f32 %v214, %v258
    %v263 = vadd.f32 %v215, %v259
    %v264 = vadd.f32 %v216, %v260
    %265 = vset.pattern.permute.xlu0 2
    %266 = vperm.xlu0 %265, %v141
    %v267 = vpop.permute.xlu0 %266
    %v269 = vlaneseq
    %v270 = vshrl.u32 %v269, 7
    %v271 = vsub.s32 2, %v270
    %v272 = vrot.slane %v142, %v271
    %v273 = vlaneseq
    %v274 = vshrl.u32 %v273, 7
    %v275 = vsub.s32 6, %v274
    %v276 = vrot.slane %v142, %v275
    %v277 = vlaneseq
    %v278 = vshrl.u32 %v277, 7
    %v279 = vsub.s32 2, %v278
    %v280 = vrot.slane %v143, %v279
    %v281 = vlaneseq
    %v282 = vshrl.u32 %v281, 7
    %v283 = vsub.s32 6, %v282
    %v284 = vrot.slane %v143, %v283
    %v289 = vlaneseq
    %v290 = vshrl.u32 %v289, 7
    %v291 = vsub.s32 2, %v290
    %v292 = vrot.slane %v272, %v291
    %v293 = vlaneseq
    %v294 = vshrl.u32 %v293, 7
    %v295 = vsub.s32 2, %v294
    %v296 = vrot.slane %v276, %v295
    %v297 = vlaneseq
    %v298 = vshrl.u32 %v297, 7
    %v299 = vsub.s32 2, %v298
    %v300 = vrot.slane %v280, %v299
    %v301 = vlaneseq
    %v302 = vshrl.u32 %v301, 7
    %v303 = vsub.s32 2, %v302
    %v304 = vrot.slane %v284, %v303
    %v305 = vmul.f32 %v267, %v292
    %v306 = vmul.f32 %v267, %v296
    %v307 = vmul.f32 %v267, %v300
    %v308 = vmul.f32 %v267, %v304
    %v309 = vadd.f32 %v261, %v305
    %v310 = vadd.f32 %v262, %v306
    %v311 = vadd.f32 %v263, %v307
    %v312 = vadd.f32 %v264, %v308
    %313 = vset.pattern.permute.xlu0 3
    %314 = vperm.xlu0 %313, %v141
    %v315 = vpop.permute.xlu0 %314
    %v317 = vlaneseq
    %v318 = vshrl.u32 %v317, 7
    %v319 = vsub.s32 3, %v318
    %v320 = vrot.slane %v142, %v319
    %v321 = vlaneseq
    %v322 = vshrl.u32 %v321, 7
    %v323 = vsub.s32 7, %v322
    %v324 = vrot.slane %v142, %v323
    %v325 = vlaneseq
    %v326 = vshrl.u32 %v325, 7
    %v327 = vsub.s32 3, %v326
    %v328 = vrot.slane %v143, %v327
    %v329 = vlaneseq
    %v330 = vshrl.u32 %v329, 7
    %v331 = vsub.s32 7, %v330
    %v332 = vrot.slane %v143, %v331
    %v337 = vlaneseq
    %v338 = vshrl.u32 %v337, 7
    %v339 = vsub.s32 3, %v338
    %v340 = vrot.slane %v320, %v339
    %v341 = vlaneseq
    %v342 = vshrl.u32 %v341, 7
    %v343 = vsub.s32 3, %v342
    %v344 = vrot.slane %v324, %v343
    %v345 = vlaneseq
    %v346 = vshrl.u32 %v345, 7
    %v347 = vsub.s32 3, %v346
    %v348 = vrot.slane %v328, %v347
    %v349 = vlaneseq
    %v350 = vshrl.u32 %v349, 7
    %v351 = vsub.s32 3, %v350
    %v352 = vrot.slane %v332, %v351
    %v353 = vmul.f32 %v315, %v340
    %v354 = vmul.f32 %v315, %v344
    %v355 = vmul.f32 %v315, %v348
    %v356 = vmul.f32 %v315, %v352
    %v357 = vadd.f32 %v309, %v353
    %v358 = vadd.f32 %v310, %v354
    %v359 = vadd.f32 %v311, %v355
    %v360 = vadd.f32 %v312, %v356
    %v361 = vrot.slane %v357, 4
    %v362 = vadd.f32 %v357, %v361
    %v363 = vrot.slane %v362, 2
    %v364 = vadd.f32 %v362, %v363
    %v365 = vrot.slane %v364, 1
    %v366 = vadd.f32 %v364, %v365
    %v367 = vrot.slane %v358, 4
    %v368 = vadd.f32 %v358, %v367
    %v369 = vrot.slane %v368, 2
    %v370 = vadd.f32 %v368, %v369
    %v371 = vrot.slane %v370, 1
    %v372 = vadd.f32 %v370, %v371
    %v373 = vrot.slane %v359, 4
    %v374 = vadd.f32 %v359, %v373
    %v375 = vrot.slane %v374, 2
    %v376 = vadd.f32 %v374, %v375
    %v377 = vrot.slane %v376, 1
    %v378 = vadd.f32 %v376, %v377
    %v379 = vrot.slane %v360, 4
    %v380 = vadd.f32 %v360, %v379
    %v381 = vrot.slane %v380, 2
    %v382 = vadd.f32 %v380, %v381
    %v383 = vrot.slane %v382, 1
    %v384 = vadd.f32 %v382, %v383
    %v385 = vmul.f32 %v357, %v357
    %v386 = vmul.f32 %v358, %v358
    %v387 = vmul.f32 %v359, %v359
    %v388 = vmul.f32 %v360, %v360
    %v389 = vrot.slane %v385, 4
    %v390 = vadd.f32 %v385, %v389
    %v391 = vrot.slane %v390, 2
    %v392 = vadd.f32 %v390, %v391
    %v393 = vrot.slane %v392, 1
    %v394 = vadd.f32 %v392, %v393
    %v395 = vrot.slane %v386, 4
    %v396 = vadd.f32 %v386, %v395
    %v397 = vrot.slane %v396, 2
    %v398 = vadd.f32 %v396, %v397
    %v399 = vrot.slane %v398, 1
    %v400 = vadd.f32 %v398, %v399
    %v401 = vrot.slane %v387, 4
    %v402 = vadd.f32 %v387, %v401
    %v403 = vrot.slane %v402, 2
    %v404 = vadd.f32 %v402, %v403
    %v405 = vrot.slane %v404, 1
    %v406 = vadd.f32 %v404, %v405
    %v407 = vrot.slane %v388, 4
    %v408 = vadd.f32 %v388, %v407
    %v409 = vrot.slane %v408, 2
    %v410 = vadd.f32 %v408, %v409
    %v411 = vrot.slane %v410, 1
    %v412 = vadd.f32 %v410, %v411
    %v413 = vmul.f32 %v366, 0.125
    %v414 = vmul.f32 %v372, 0.125
    %v415 = vmul.f32 %v378, 0.125
    %v416 = vmul.f32 %v384, 0.125
    %v417 = vmul.f32 %v394, 0.125
    %v418 = vmul.f32 %v400, 0.125
    %v419 = vmul.f32 %v406, 0.125
    %v420 = vmul.f32 %v412, 0.125
    %v421 = vmul.f32 %v413, %v413
    %v422 = vmul.f32 %v414, %v414
    %v423 = vmul.f32 %v415, %v415
    %v424 = vmul.f32 %v416, %v416
    %v425 = vsub.f32 %v417, %v421
    %v426 = vsub.f32 %v418, %v422
    %v427 = vsub.f32 %v419, %v423
    %v428 = vsub.f32 %v420, %v424
    %v429 = vld [vmem:[#allocation3] sm:$0xf]
    %v430 = vadd.f32 %v425, 1e-05
    %v431 = vadd.f32 %v426, 1e-05
    %v432 = vadd.f32 %v427, 1e-05
    %v433 = vadd.f32 %v428, 1e-05
    %v434 = vrsqrt.pop %v430
    %v435 = vrsqrt.pop %v431
    %v436 = vrsqrt.pop %v432
    %v437 = vrsqrt.pop %v433
    %v442 = vcombine.low %v434, %v435
    %v443 = vcombine.low %v436, %v437
    %v445 = vunpack.c.l.s4 1966171168
    %v446 = vunpack.c.0.s8 %v445
    %v447 = vlaneseq
    %v448 = vshrl.u32 %v447, 7
    %v449 = vsub.s32 %v446, %v448
    %v450 = vrot.slane %v442, %v449
    %v452 = vunpack.c.l.s4 1966171168
    %v453 = vunpack.c.0.s8 %v452
    %v454 = vlaneseq
    %v455 = vshrl.u32 %v454, 7
    %v456 = vsub.s32 %v453, %v455
    %v457 = vrot.slane %v443, %v456
    %v458 = vcombine.low %v450, %v457
    %v460 = vunpack.c.l.s4 1966171168
    %v461 = vunpack.c.0.s8 %v460
    %v462 = vlaneseq
    %v463 = vshrl.u32 %v462, 7
    %v464 = vsub.s32 %v461, %v463
    %v465 = vrot.slane %v458, %v464
    %v467 = vmul.f32 %v429, %v465
    %v468 = vld [vmem:[#allocation5] sm:$0xf]
    %v470 = vlaneseq
    %v471 = vshrl.u32 %v470, 7
    %v472 = vsub.s32 0, %v471
    %v473 = vrot.slane %v467, %v472
    %v474 = vlaneseq
    %v475 = vshrl.u32 %v474, 7
    %v476 = vsub.s32 1, %v475
    %v477 = vrot.slane %v467, %v476
    %v478 = vlaneseq
    %v479 = vshrl.u32 %v478, 7
    %v480 = vsub.s32 2, %v479
    %v481 = vrot.slane %v467, %v480
    %v482 = vlaneseq
    %v483 = vshrl.u32 %v482, 7
    %v484 = vsub.s32 3, %v483
    %v485 = vrot.slane %v467, %v484
    %v490 = vmul.f32 %v413, %v473
    %v491 = vmul.f32 %v414, %v477
    %v492 = vmul.f32 %v415, %v481
    %v493 = vmul.f32 %v416, %v485
    %v498 = vcombine.low %v490, %v491
    %v499 = vcombine.low %v492, %v493
    %v501 = vunpack.c.l.s4 1966171168
    %v502 = vunpack.c.0.s8 %v501
    %v503 = vlaneseq
    %v504 = vshrl.u32 %v503, 7
    %v505 = vsub.s32 %v502, %v504
    %v506 = vrot.slane %v498, %v505
    %v508 = vunpack.c.l.s4 1966171168
    %v509 = vunpack.c.0.s8 %v508
    %v510 = vlaneseq
    %v511 = vshrl.u32 %v510, 7
    %v512 = vsub.s32 %v509, %v511
    %v513 = vrot.slane %v499, %v512
    %v514 = vcombine.low %v506, %v513
    %v516 = vunpack.c.l.s4 1966171168
    %v517 = vunpack.c.0.s8 %v516
    %v518 = vlaneseq
    %v519 = vshrl.u32 %v518, 7
    %v520 = vsub.s32 %v517, %v519
    %v521 = vrot.slane %v514, %v520
    %v523 = vsub.f32 %v468, %v521
    %v524 = vmul.f32 %v357, %v473
    %v525 = vmul.f32 %v358, %v477
    %v526 = vmul.f32 %v359, %v481
    %v527 = vmul.f32 %v360, %v485
    %v529 = vlaneseq
    %v530 = vshrl.u32 %v529, 7
    %v531 = vsub.s32 0, %v530
    %v532 = vrot.slane %v523, %v531
    %v533 = vlaneseq
    %v534 = vshrl.u32 %v533, 7
    %v535 = vsub.s32 1, %v534
    %v536 = vrot.slane %v523, %v535
    %v537 = vlaneseq
    %v538 = vshrl.u32 %v537, 7
    %v539 = vsub.s32 2, %v538
    %v540 = vrot.slane %v523, %v539
    %v541 = vlaneseq
    %v542 = vshrl.u32 %v541, 7
    %v543 = vsub.s32 3, %v542
    %v544 = vrot.slane %v523, %v543
    %v549 = vadd.f32 %v524, %v532
    %v550 = vadd.f32 %v525, %v536
    %v551 = vadd.f32 %v526, %v540
    %v552 = vadd.f32 %v527, %v544
    %v553 = vmax.f32 %v549, 0.0
    %v554 = vmax.f32 %v550, 0.0
    %v555 = vmax.f32 %v551, 0.0
    %v556 = vmax.f32 %v552, 0.0
    %v557 = vld [vmem:[%s11] sm:$0xff]
    %v558 = vld [vmem:[%s11 + $0x8] sm:$0xff]
    %v559 = vld [vmem:[%s11 + $0x10] sm:$0xff]
    %v560 = vld [vmem:[%s11 + $0x18] sm:$0xff]
    %v561 = vmul.f32 %v553, %v557
    %v562 = vmul.f32 %v554, %v558
    %v563 = vmul.f32 %v555, %v559
    %v564 = vmul.f32 %v556, %v560
    %v565 = vpack.c.bf16 %v561, %v561
    %v566 = vpack.c.bf16 %v562, %v562
    %v567 = vpack.c.bf16 %v563, %v563
    %v568 = vpack.c.bf16 %v564, %v564
    %v569 = vld [vmem:[#allocation7] sm:$0xff]
    %v570 = vld [vmem:[#allocation7 + $0x8] sm:$0xff]
    %v571 = vld [vmem:[#allocation7 + $0x10] sm:$0xff]
    %v572 = vld [vmem:[#allocation7 + $0x18] sm:$0xff]
    %v573 = vld [vmem:[#allocation7 + $0x20] sm:$0xff]
    %v574 = vld [vmem:[#allocation7 + $0x28] sm:$0xff]
    %v575 = vld [vmem:[#allocation7 + $0x30] sm:$0xff]
    %v576 = vld [vmem:[#allocation7 + $0x38] sm:$0xff]
    %v577 = vld [vmem:[#allocation7 + $0x40] sm:$0xff]
    %v578 = vld [vmem:[#allocation7 + $0x48] sm:$0xff]
    %v579 = vld [vmem:[#allocation7 + $0x50] sm:$0xff]
    %v580 = vld [vmem:[#allocation7 + $0x58] sm:$0xff]
    %v581 = vld [vmem:[#allocation7 + $0x60] sm:$0xff]
    %v582 = vld [vmem:[#allocation7 + $0x68] sm:$0xff]
    %v583 = vld [vmem:[#allocation7 + $0x70] sm:$0xff]
    %v584 = vld [vmem:[#allocation7 + $0x78] sm:$0xff]
    %v585 = vld [vmem:[#allocation7 + $0x80] sm:$0xff]
    %v586 = vld [vmem:[#allocation7 + $0x88] sm:$0xff]
    %v587 = vld [vmem:[#allocation7 + $0x90] sm:$0xff]
    %v588 = vld [vmem:[#allocation7 + $0x98] sm:$0xff]
    %v589 = vld [vmem:[#allocation7 + $0xa0] sm:$0xff]
    %v590 = vld [vmem:[#allocation7 + $0xa8] sm:$0xff]
    %v591 = vld [vmem:[#allocation7 + $0xb0] sm:$0xff]
    %v592 = vld [vmem:[#allocation7 + $0xb8] sm:$0xff]
    %v593 = vld [vmem:[#allocation7 + $0xc0] sm:$0xff]
    %v594 = vld [vmem:[#allocation7 + $0xc8] sm:$0xff]
    %v595 = vld [vmem:[#allocation7 + $0xd0] sm:$0xff]
    %v596 = vld [vmem:[#allocation7 + $0xd8] sm:$0xff]
    %v597 = vld [vmem:[#allocation7 + $0xe0] sm:$0xff]
    %v598 = vld [vmem:[#allocation7 + $0xe8] sm:$0xff]
    %v599 = vld [vmem:[#allocation7 + $0xf0] sm:$0xff]
    %v600 = vld [vmem:[#allocation7 + $0xf8] sm:$0xff]
    %v601 = vld [vmem:[#allocation7 + $0x100] sm:$0xff]
    %v602 = vld [vmem:[#allocation7 + $0x108] sm:$0xff]
    %v603 = vld [vmem:[#allocation7 + $0x110] sm:$0xff]
    %v604 = vld [vmem:[#allocation7 + $0x118] sm:$0xff]
    %v605 = vld [vmem:[#allocation7 + $0x120] sm:$0xff]
    %v606 = vld [vmem:[#allocation7 + $0x128] sm:$0xff]
    %v607 = vld [vmem:[#allocation7 + $0x130] sm:$0xff]
    %v608 = vld [vmem:[#allocation7 + $0x138] sm:$0xff]
    %v609 = vld [vmem:[#allocation7 + $0x140] sm:$0xff]
    %v610 = vld [vmem:[#allocation7 + $0x148] sm:$0xff]
    %v611 = vld [vmem:[#allocation7 + $0x150] sm:$0xff]
    %v612 = vld [vmem:[#allocation7 + $0x158] sm:$0xff]
    %v613 = vld [vmem:[#allocation7 + $0x160] sm:$0xff]
    %v614 = vld [vmem:[#allocation7 + $0x168] sm:$0xff]
    %v615 = vld [vmem:[#allocation7 + $0x170] sm:$0xff]
    %v616 = vld [vmem:[#allocation7 + $0x178] sm:$0xff]
    %v617 = vld [vmem:[#allocation7 + $0x180] sm:$0xff]
    %v618 = vld [vmem:[#allocation7 + $0x188] sm:$0xff]
    %v619 = vld [vmem:[#allocation7 + $0x190] sm:$0xff]
    %v620 = vld [vmem:[#allocation7 + $0x198] sm:$0xff]
    %v621 = vld [vmem:[#allocation7 + $0x1a0] sm:$0xff]
    %v622 = vld [vmem:[#allocation7 + $0x1a8] sm:$0xff]
    %v623 = vld [vmem:[#allocation7 + $0x1b0] sm:$0xff]
    %v624 = vld [vmem:[#allocation7 + $0x1b8] sm:$0xff]
    %v625 = vld [vmem:[#allocation7 + $0x1c0] sm:$0xff]
    %v626 = vld [vmem:[#allocation7 + $0x1c8] sm:$0xff]
    %v627 = vld [vmem:[#allocation7 + $0x1d0] sm:$0xff]
    %v628 = vld [vmem:[#allocation7 + $0x1d8] sm:$0xff]
    %v629 = vld [vmem:[#allocation7 + $0x1e0] sm:$0xff]
    %v630 = vld [vmem:[#allocation7 + $0x1e8] sm:$0xff]
    %v631 = vld [vmem:[#allocation7 + $0x1f0] sm:$0xff]
    %v632 = vld [vmem:[#allocation7 + $0x1f8] sm:$0xff]
    %v633 = vld [vmem:[#allocation8] sm:$0x3]
    %v635 = vlaneseq
    %v636 = vshrl.u32 %v635, 7
    %v637 = vsub.s32 0, %v636
    %v638 = vrot.slane %v633, %v637
    %v639 = vlaneseq
    %v640 = vshrl.u32 %v639, 7
    %v641 = vsub.s32 1, %v640
    %v642 = vrot.slane %v633, %v641
    %v709 = vunpack.c.l.b16 %v569
    %v710 = vunpack.c.h.b16 %v569
    %v711 = vunpack.c.l.b16 %v570
    %v712 = vunpack.c.h.b16 %v570
    %v713 = vunpack.c.l.b16 %v571
    %v714 = vunpack.c.h.b16 %v571
    %v715 = vunpack.c.l.b16 %v572
    %v716 = vunpack.c.h.b16 %v572
    %v717 = vunpack.c.l.b16 %v573
    %v718 = vunpack.c.h.b16 %v573
    %v719 = vunpack.c.l.b16 %v574
    %v720 = vunpack.c.h.b16 %v574
    %v721 = vunpack.c.l.b16 %v575
    %v722 = vunpack.c.h.b16 %v575
    %v723 = vunpack.c.l.b16 %v576
    %v724 = vunpack.c.h.b16 %v576
    %v725 = vunpack.c.l.b16 %v577
    %v726 = vunpack.c.h.b16 %v577
    %v727 = vunpack.c.l.b16 %v578
    %v728 = vunpack.c.h.b16 %v578
    %v729 = vunpack.c.l.b16 %v579
    %v730 = vunpack.c.h.b16 %v579
    %v731 = vunpack.c.l.b16 %v580
    %v732 = vunpack.c.h.b16 %v580
    %v733 = vunpack.c.l.b16 %v581
    %v734 = vunpack.c.h.b16 %v581
    %v735 = vunpack.c.l.b16 %v582
    %v736 = vunpack.c.h.b16 %v582
    %v737 = vunpack.c.l.b16 %v583
    %v738 = vunpack.c.h.b16 %v583
    %v739 = vunpack.c.l.b16 %v584
    %v740 = vunpack.c.h.b16 %v584
    %v741 = vunpack.c.l.b16 %v585
    %v742 = vunpack.c.h.b16 %v585
    %v743 = vunpack.c.l.b16 %v586
    %v744 = vunpack.c.h.b16 %v586
    %v745 = vunpack.c.l.b16 %v587
    %v746 = vunpack.c.h.b16 %v587
    %v747 = vunpack.c.l.b16 %v588
    %v748 = vunpack.c.h.b16 %v588
    %v749 = vunpack.c.l.b16 %v589
    %v750 = vunpack.c.h.b16 %v589
    %v751 = vunpack.c.l.b16 %v590
    %v752 = vunpack.c.h.b16 %v590
    %v753 = vunpack.c.l.b16 %v591
    %v754 = vunpack.c.h.b16 %v591
    %v755 = vunpack.c.l.b16 %v592
    %v756 = vunpack.c.h.b16 %v592
    %v757 = vunpack.c.l.b16 %v593
    %v758 = vunpack.c.h.b16 %v593
    %v759 = vunpack.c.l.b16 %v594
    %v760 = vunpack.c.h.b16 %v594
    %v761 = vunpack.c.l.b16 %v595
    %v762 = vunpack.c.h.b16 %v595
    %v763 = vunpack.c.l.b16 %v596
    %v764 = vunpack.c.h.b16 %v596
    %v765 = vunpack.c.l.b16 %v597
    %v766 = vunpack.c.h.b16 %v597
    %v767 = vunpack.c.l.b16 %v598
    %v768 = vunpack.c.h.b16 %v598
    %v769 = vunpack.c.l.b16 %v599
    %v770 = vunpack.c.h.b16 %v599
    %v771 = vunpack.c.l.b16 %v600
    %v772 = vunpack.c.h.b16 %v600
    %v773 = vunpack.c.l.b16 %v601
    %v774 = vunpack.c.h.b16 %v601
    %v775 = vunpack.c.l.b16 %v602
    %v776 = vunpack.c.h.b16 %v602
    %v777 = vunpack.c.l.b16 %v603
    %v778 = vunpack.c.h.b16 %v603
    %v779 = vunpack.c.l.b16 %v604
    %v780 = vunpack.c.h.b16 %v604
    %v781 = vunpack.c.l.b16 %v605
    %v782 = vunpack.c.h.b16 %v605
    %v783 = vunpack.c.l.b16 %v606
    %v784 = vunpack.c.h.b16 %v606
    %v785 = vunpack.c.l.b16 %v607
    %v786 = vunpack.c.h.b16 %v607
    %v787 = vunpack.c.l.b16 %v608
    %v788 = vunpack.c.h.b16 %v608
    %v789 = vunpack.c.l.b16 %v609
    %v790 = vunpack.c.h.b16 %v609
    %v791 = vunpack.c.l.b16 %v610
    %v792 = vunpack.c.h.b16 %v610
    %v793 = vunpack.c.l.b16 %v611
    %v794 = vunpack.c.h.b16 %v611
    %v795 = vunpack.c.l.b16 %v612
    %v796 = vunpack.c.h.b16 %v612
    %v797 = vunpack.c.l.b16 %v613
    %v798 = vunpack.c.h.b16 %v613
    %v799 = vunpack.c.l.b16 %v614
    %v800 = vunpack.c.h.b16 %v614
    %v801 = vunpack.c.l.b16 %v615
    %v802 = vunpack.c.h.b16 %v615
    %v803 = vunpack.c.l.b16 %v616
    %v804 = vunpack.c.h.b16 %v616
    %v805 = vunpack.c.l.b16 %v617
    %v806 = vunpack.c.h.b16 %v617
    %v807 = vunpack.c.l.b16 %v618
    %v808 = vunpack.c.h.b16 %v618
    %v809 = vunpack.c.l.b16 %v619
    %v810 = vunpack.c.h.b16 %v619
    %v811 = vunpack.c.l.b16 %v620
    %v812 = vunpack.c.h.b16 %v620
    %v813 = vunpack.c.l.b16 %v621
    %v814 = vunpack.c.h.b16 %v621
    %v815 = vunpack.c.l.b16 %v622
    %v816 = vunpack.c.h.b16 %v622
    %v817 = vunpack.c.l.b16 %v623
    %v818 = vunpack.c.h.b16 %v623
    %v819 = vunpack.c.l.b16 %v624
    %v820 = vunpack.c.h.b16 %v624
    %v821 = vunpack.c.l.b16 %v625
    %v822 = vunpack.c.h.b16 %v625
    %v823 = vunpack.c.l.b16 %v626
    %v824 = vunpack.c.h.b16 %v626
    %v825 = vunpack.c.l.b16 %v627
    %v826 = vunpack.c.h.b16 %v627
    %v827 = vunpack.c.l.b16 %v628
    %v828 = vunpack.c.h.b16 %v628
    %v829 = vunpack.c.l.b16 %v629
    %v830 = vunpack.c.h.b16 %v629
    %v831 = vunpack.c.l.b16 %v630
    %v832 = vunpack.c.h.b16 %v630
    %v833 = vunpack.c.l.b16 %v631
    %v834 = vunpack.c.h.b16 %v631
    %v835 = vunpack.c.l.b16 %v632
    %v836 = vunpack.c.h.b16 %v632
    %v837 = vpack.c.b16 %v711, %v709
    %v838 = vpack.c.b16 %v712, %v710
    %v839 = vpack.c.b16 %v715, %v713
    %v840 = vpack.c.b16 %v716, %v714
    %v841 = vpack.c.b16 %v719, %v717
    %v842 = vpack.c.b16 %v720, %v718
    %v843 = vpack.c.b16 %v723, %v721
    %v844 = vpack.c.b16 %v724, %v722
    %v845 = vpack.c.b16 %v727, %v725
    %v846 = vpack.c.b16 %v728, %v726
    %v847 = vpack.c.b16 %v731, %v729
    %v848 = vpack.c.b16 %v732, %v730
    %v849 = vpack.c.b16 %v735, %v733
    %v850 = vpack.c.b16 %v736, %v734
    %v851 = vpack.c.b16 %v739, %v737
    %v852 = vpack.c.b16 %v740, %v738
    %v853 = vpack.c.b16 %v743, %v741
    %v854 = vpack.c.b16 %v744, %v742
    %v855 = vpack.c.b16 %v747, %v745
    %v856 = vpack.c.b16 %v748, %v746
    %v857 = vpack.c.b16 %v751, %v749
    %v858 = vpack.c.b16 %v752, %v750
    %v859 = vpack.c.b16 %v755, %v753
    %v860 = vpack.c.b16 %v756, %v754
    %v861 = vpack.c.b16 %v759, %v757
    %v862 = vpack.c.b16 %v760, %v758
    %v863 = vpack.c.b16 %v763, %v761
    %v864 = vpack.c.b16 %v764, %v762
    %v865 = vpack.c.b16 %v767, %v765
    %v866 = vpack.c.b16 %v768, %v766
    %v867 = vpack.c.b16 %v771, %v769
    %v868 = vpack.c.b16 %v772, %v770
    %v869 = vpack.c.b16 %v775, %v773
    %v870 = vpack.c.b16 %v776, %v774
    %v871 = vpack.c.b16 %v779, %v777
    %v872 = vpack.c.b16 %v780, %v778
    %v873 = vpack.c.b16 %v783, %v781
    %v874 = vpack.c.b16 %v784, %v782
    %v875 = vpack.c.b16 %v787, %v785
    %v876 = vpack.c.b16 %v788, %v786
    %v877 = vpack.c.b16 %v791, %v789
    %v878 = vpack.c.b16 %v792, %v790
    %v879 = vpack.c.b16 %v795, %v793
    %v880 = vpack.c.b16 %v796, %v794
    %v881 = vpack.c.b16 %v799, %v797
    %v882 = vpack.c.b16 %v800, %v798
    %v883 = vpack.c.b16 %v803, %v801
    %v884 = vpack.c.b16 %v804, %v802
    %v885 = vpack.c.b16 %v807, %v805
    %v886 = vpack.c.b16 %v808, %v806
    %v887 = vpack.c.b16 %v811, %v809
    %v888 = vpack.c.b16 %v812, %v810
    %v889 = vpack.c.b16 %v815, %v813
    %v890 = vpack.c.b16 %v816, %v814
    %v891 = vpack.c.b16 %v819, %v817
    %v892 = vpack.c.b16 %v820, %v818
    %v893 = vpack.c.b16 %v823, %v821
    %v894 = vpack.c.b16 %v824, %v822
    %v895 = vpack.c.b16 %v827, %v825
    %v896 = vpack.c.b16 %v828, %v826
    %v897 = vpack.c.b16 %v831, %v829
    %v898 = vpack.c.b16 %v832, %v830
    %v899 = vpack.c.b16 %v835, %v833
    %v900 = vpack.c.b16 %v836, %v834
    %965 = vmatprep.subr.bf16.mxu0 %v838
    %966 = vmatpush1.bf16.msra.mxu0 %v837
    %967 = vmatprep.subr.bf16.mxu0 %v840
    %968 = vmatpush1.bf16.msra.mxu0 %v839
    %969 = vmatprep.subr.bf16.mxu0 %v842
    %970 = vmatpush1.bf16.msra.mxu0 %v841
    %971 = vmatprep.subr.bf16.mxu0 %v844
    %972 = vmatpush1.bf16.msra.mxu0 %v843
    %973 = vmatprep.subr.bf16.mxu0 %v846
    %974 = vmatpush1.bf16.msra.mxu0 %v845
    %975 = vmatprep.subr.bf16.mxu0 %v848
    %976 = vmatpush1.bf16.msra.mxu0 %v847
    %977 = vmatprep.subr.bf16.mxu0 %v850
    %978 = vmatpush1.bf16.msra.mxu0 %v849
    %979 = vmatprep.subr.bf16.mxu0 %v852
    %980 = vmatpush1.bf16.msra.mxu0 %v851
    %981 = vmatprep.subr.bf16.mxu0 %v854
    %982 = vmatpush1.bf16.msra.mxu0 %v853
    %983 = vmatprep.subr.bf16.mxu0 %v856
    %984 = vmatpush1.bf16.msra.mxu0 %v855
    %985 = vmatprep.subr.bf16.mxu0 %v858
    %986 = vmatpush1.bf16.msra.mxu0 %v857
    %987 = vmatprep.subr.bf16.mxu0 %v860
    %988 = vmatpush1.bf16.msra.mxu0 %v859
    %989 = vmatprep.subr.bf16.mxu0 %v862
    %990 = vmatpush1.bf16.msra.mxu0 %v861
    %991 = vmatprep.subr.bf16.mxu0 %v864
    %992 = vmatpush1.bf16.msra.mxu0 %v863
    %993 = vmatprep.subr.bf16.mxu0 %v866
    %994 = vmatpush1.bf16.msra.mxu0 %v865
    %995 = vmatprep.subr.bf16.mxu0 %v868
    %996 = vmatpush1.bf16.msra.mxu0 %v867
    %997 = vmatprep.mubr.bf16.mxu0 %v566
    %998 = vmatmul.mubr.bf16.gmra.mrb[0].mxu0 %v565
    %v999 = vpop.f32.mrb[0].mxu0
    %v1000 = vadd.f32 %v638, %v999
    %v1001 = vpop.f32.mrb[0].mxu0
    %v1002 = vadd.f32 %v642, %v1001
    %v1003 = vpop.f32.mrb[0].mxu0
    %v1004 = vpop.f32.mrb[0].mxu0
    %1005 = vdwg.mxu0
    %1006 = vmatprep.subr.bf16.mxu0 %v870
    %1007 = vmatpush1.bf16.msra.mxu0 %v869
    %1008 = vmatprep.subr.bf16.mxu0 %v872
    %1009 = vmatpush1.bf16.msra.mxu0 %v871
    %1010 = vmatprep.subr.bf16.mxu0 %v874
    %1011 = vmatpush1.bf16.msra.mxu0 %v873
    %1012 = vmatprep.subr.bf16.mxu0 %v876
    %1013 = vmatpush1.bf16.msra.mxu0 %v875
    %1014 = vmatprep.subr.bf16.mxu0 %v878
    %1015 = vmatpush1.bf16.msra.mxu0 %v877
    %1016 = vmatprep.subr.bf16.mxu0 %v880
    %1017 = vmatpush1.bf16.msra.mxu0 %v879
    %1018 = vmatprep.subr.bf16.mxu0 %v882
    %1019 = vmatpush1.bf16.msra.mxu0 %v881
    %1020 = vmatprep.subr.bf16.mxu0 %v884
    %1021 = vmatpush1.bf16.msra.mxu0 %v883
    %1022 = vmatprep.subr.bf16.mxu0 %v886
    %1023 = vmatpush1.bf16.msra.mxu0 %v885
    %1024 = vmatprep.subr.bf16.mxu0 %v888
    %1025 = vmatpush1.bf16.msra.mxu0 %v887
    %1026 = vmatprep.subr.bf16.mxu0 %v890
    %1027 = vmatpush1.bf16.msra.mxu0 %v889
    %1028 = vmatprep.subr.bf16.mxu0 %v892
    %1029 = vmatpush1.bf16.msra.mxu0 %v891
    %1030 = vmatprep.subr.bf16.mxu0 %v894
    %1031 = vmatpush1.bf16.msra.mxu0 %v893
    %1032 = vmatprep.subr.bf16.mxu0 %v896
    %1033 = vmatpush1.bf16.msra.mxu0 %v895
    %1034 = vmatprep.subr.bf16.mxu0 %v898
    %1035 = vmatpush1.bf16.msra.mxu0 %v897
    %1036 = vmatprep.subr.bf16.mxu0 %v900
    %1037 = vmatpush1.bf16.msra.mxu0 %v899
    %1038 = vmatprep.mubr.bf16.mxu0 %v568
    %1039 = vmatmul.mubr.bf16.gmra.mrb[0].mxu0 %v567
    %v1040 = vpop.f32.mrb[0].mxu0
    %v1041 = vadd.f32 %v1000, %v1040
    %v1042 = vpop.f32.mrb[0].mxu0
    %v1043 = vadd.f32 %v1002, %v1042
    %v1044 = vpop.f32.mrb[0].mxu0
    %v1045 = vpop.f32.mrb[0].mxu0
    %1046 = vdwg.mxu0
    %v1047 = vrot.slane %v1041, 4
    %v1048 = vadd.f32 %v1041, %v1047
    %v1049 = vrot.slane %v1048, 2
    %v1050 = vadd.f32 %v1048, %v1049
    %v1051 = vrot.slane %v1050, 1
    %v1052 = vadd.f32 %v1050, %v1051
    %v1053 = vrot.slane %v1043, 4
    %v1054 = vadd.f32 %v1043, %v1053
    %v1055 = vrot.slane %v1054, 2
    %v1056 = vadd.f32 %v1054, %v1055
    %v1057 = vrot.slane %v1056, 1
    %v1058 = vadd.f32 %v1056, %v1057
    %v1059 = vmul.f32 %v1041, %v1041
    %v1060 = vmul.f32 %v1043, %v1043
    %v1061 = vrot.slane %v1059, 4
    %v1062 = vadd.f32 %v1059, %v1061
    %v1063 = vrot.slane %v1062, 2
    %v1064 = vadd.f32 %v1062, %v1063
    %v1065 = vrot.slane %v1064, 1
    %v1066 = vadd.f32 %v1064, %v1065
    %v1067 = vrot.slane %v1060, 4
    %v1068 = vadd.f32 %v1060, %v1067
    %v1069 = vrot.slane %v1068, 2
    %v1070 = vadd.f32 %v1068, %v1069
    %v1071 = vrot.slane %v1070, 1
    %v1072 = vadd.f32 %v1070, %v1071
    %v1073 = vmul.f32 %v1052, 0.125
    %v1074 = vmul.f32 %v1058, 0.125
    %v1075 = vmul.f32 %v1066, 0.125
    %v1076 = vmul.f32 %v1072, 0.125
    %v1077 = vmul.f32 %v1073, %v1073
    %v1078 = vmul.f32 %v1074, %v1074
    %v1079 = vsub.f32 %v1075, %v1077
    %v1080 = vsub.f32 %v1076, %v1078
    %v1081 = vld [vmem:[#allocation10] sm:$0x3]
    %v1082 = vadd.f32 %v1079, 1e-05
    %v1083 = vadd.f32 %v1080, 1e-05
    %v1084 = vrsqrt.pop %v1082
    %v1085 = vrsqrt.pop %v1083
    %v1088 = vcombine.low %v1084, %v1085
    %v1090 = vunpack.c.l.s4 1966171168
    %v1091 = vunpack.c.0.s8 %v1090
    %v1092 = vlaneseq
    %v1093 = vshrl.u32 %v1092, 7
    %v1094 = vsub.s32 %v1091, %v1093
    %v1095 = vrot.slane %v1088, %v1094
    %v1097 = vunpack.c.l.s4 1966171168
    %v1098 = vunpack.c.0.s8 %v1097
    %v1099 = vlaneseq
    %v1100 = vshrl.u32 %v1099, 7
    %v1101 = vsub.s32 %v1098, %v1100
    %v1102 = vrot.slane %v1095, %v1101
    %v1104 = vmul.f32 %v1081, %v1102
    %v1105 = vld [vmem:[#allocation11] sm:$0x3]
    %v1107 = vlaneseq
    %v1108 = vshrl.u32 %v1107, 7
    %v1109 = vsub.s32 0, %v1108
    %v1110 = vrot.slane %v1104, %v1109
    %v1111 = vlaneseq
    %v1112 = vshrl.u32 %v1111, 7
    %v1113 = vsub.s32 1, %v1112
    %v1114 = vrot.slane %v1104, %v1113
    %v1117 = vmul.f32 %v1073, %v1110
    %v1118 = vmul.f32 %v1074, %v1114
    %v1121 = vcombine.low %v1117, %v1118
    %v1123 = vunpack.c.l.s4 1966171168
    %v1124 = vunpack.c.0.s8 %v1123
    %v1125 = vlaneseq
    %v1126 = vshrl.u32 %v1125, 7
    %v1127 = vsub.s32 %v1124, %v1126
    %v1128 = vrot.slane %v1121, %v1127
    %v1130 = vunpack.c.l.s4 1966171168
    %v1131 = vunpack.c.0.s8 %v1130
    %v1132 = vlaneseq
    %v1133 = vshrl.u32 %v1132, 7
    %v1134 = vsub.s32 %v1131, %v1133
    %v1135 = vrot.slane %v1128, %v1134
    %v1137 = vsub.f32 %v1105, %v1135
    %v1138 = vmul.f32 %v1041, %v1110
    %v1139 = vmul.f32 %v1043, %v1114
    %v1141 = vlaneseq
    %v1142 = vshrl.u32 %v1141, 7
    %v1143 = vsub.s32 0, %v1142
    %v1144 = vrot.slane %v1137, %v1143
    %v1145 = vlaneseq
    %v1146 = vshrl.u32 %v1145, 7
    %v1147 = vsub.s32 1, %v1146
    %v1148 = vrot.slane %v1137, %v1147
    %v1151 = vadd.f32 %v1138, %v1144
    %v1152 = vadd.f32 %v1139, %v1148
    %v1153 = vmax.f32 %v1151, 0.0
    %v1154 = vmax.f32 %v1152, 0.0
    %v1155 = vld [vmem:[#allocation14] sm:$0xff]
    %v1156 = vld [vmem:[#allocation14 + $0x8] sm:$0xff]
    %v1157 = vmul.f32 %v1153, %v1155
    %v1158 = vmul.f32 %v1154, %v1156
    %v1159 = vld [vmem:[#allocation13] sm:$0x3]
    %v1161 = vlaneseq
    %v1162 = vshrl.u32 %v1161, 7
    %v1163 = vsub.s32 0, %v1162
    %v1164 = vrot.slane %v1159, %v1163
    %v1165 = vlaneseq
    %v1166 = vshrl.u32 %v1165, 7
    %v1167 = vsub.s32 1, %v1166
    %v1168 = vrot.slane %v1159, %v1167
    %v1171 = vmul.f32 %v1157, %v1164
    %v1172 = vmul.f32 %v1158, %v1168
    %v1173 = vadd.f32 %v1171, %v1172
    %1174 = vadd.xlane.f32.xlu0 %v1173
    %v1175 = vpop.xlane.xlu0 %1174
    %v1176 = vld [vmem:[#allocation2] sm:$0x1]
    %v1178 = vlaneseq
    %v1179 = vshrl.u32 %v1178, 7
    %v1180 = vsub.s32 0, %v1179
    %v1181 = vrot.slane %v1176, %v1180
    %v1183 = vadd.f32 %v1175, %v1181
    %v1184 = vmax.f32 %v1183, 0.0
    %vm1185 = vcmask 7168
    %1186 = vst.msk [vmem:[%s13] sm:$0xff] %vm1185, %v1184
    // Predicated region
    $region86: #{tpu_custom_call.1} parent=1 // pred_check
      _
    $region87: #{tpu_custom_call.1} parent=1 // pred_check_branch
      %1188 = sbr.rel (0) target = $region89
    $region88: #{tpu_custom_call.1} parent=1 // pred_region
      _
    $region89: #{tpu_custom_call.1} parent=1 // pred_fallthru
      _
    // Predicated region
    $region90: #{tpu_custom_call.1} parent=1 // pred_check
      _
    $region91: #{tpu_custom_call.1} parent=1 // pred_check_branch
      %1190 = sbr.rel (0) target = $region93
    $region92: #{tpu_custom_call.1} parent=1 // pred_region
      _
    $region93: #{tpu_custom_call.1} parent=1 // pred_fallthru
      _
    %1191 = vsyncpa [#allocation4], 1
    %1192 = vsyncpa [#allocation6], 1
    %1193 = vsyncpa [#allocation9], 1
    %1194 = vsyncpa [#allocation12], 1
    %1195 = vsyncpa [#allocation15], 1

</llo_original>
